<compile_context>
chip_gen: v7x
topology: tpu7x:2x2x1
jax: 0.10.0
libtpu: 0.0.40
codegen_flags: <defaults>
</compile_context>

<pallas_src>
import jax
import jax.numpy as jnp
from jax.experimental import pallas as pl
from jax.experimental.pallas import tpu as pltpu

IN_FEATURES = 20
OUT_FEATURES = 2


def linear_kernel(x_ref, wb_ref, o_ref):
    # x_ref : (B, IN)        activations
    # wb_ref: (IN + 1, OUT)  rows [0:IN] = weight^T, row [IN] = bias
    # o_ref : (B, OUT)
    x = x_ref[...]
    w = wb_ref[:IN_FEATURES, :]          # (IN, OUT) — static slice, no copy
    b = wb_ref[IN_FEATURES:, :]          # (1, OUT)  — broadcasts over B
    # y[b, o] = sum_k x[b, k] * w[k, o]  (standard contraction, no transpose)
    y = jnp.dot(x, w, preferred_element_type=jnp.float32) + b
    o_ref[...] = y.astype(o_ref.dtype)


@jax.jit
def linear_pallas(x, weight, bias):
    """x: [B, IN] f32, weight: [OUT, IN] f32 (PyTorch layout), bias: [OUT] f32."""
    B = x.shape[0]

    # Pack transposed weight and bias into one tile -> one DMA instead of two.
    # This is 21*2*4 = 168 bytes of static parameter data; under jit the
    # transpose + concat are constant-folded / fused away.
    wb = jnp.concatenate(
        [weight.T, bias.reshape(1, OUT_FEATURES)], axis=0
    ).astype(jnp.float32)                                   # (IN + 1, OUT)

    flops = 2 * B * IN_FEATURES * OUT_FEATURES
    bytes_accessed = 4 * (
        B * IN_FEATURES                       # x
        + (IN_FEATURES + 1) * OUT_FEATURES    # packed weight+bias
        + B * OUT_FEATURES                    # output
    )

    return pl.pallas_call(
        linear_kernel,
        out_shape=jax.ShapeDtypeStruct((B, OUT_FEATURES), x.dtype),
        # Gridless call: full arrays resident in VMEM (tiny), no pipeline loop.
        in_specs=[
            pl.BlockSpec(memory_space=pltpu.MemorySpace.VMEM),
            pl.BlockSpec(memory_space=pltpu.MemorySpace.VMEM),
        ],
        out_specs=pl.BlockSpec(memory_space=pltpu.MemorySpace.VMEM),
        cost_estimate=pl.CostEstimate(
            flops=flops, transcendentals=0, bytes_accessed=bytes_accessed),
    )(x, wb)


if __name__ == "__main__":
    key = jax.random.PRNGKey(0)
    kx, kw, kb = jax.random.split(key, 3)

    B = 8  # small batch
    x = jax.random.normal(kx, (B, IN_FEATURES), dtype=jnp.float32)

    # Deterministic parameter init (PyTorch-style uniform bound 1/sqrt(fan_in)).
    bound = 1.0 / (IN_FEATURES ** 0.5)
    weight = jax.random.uniform(
        kw, (OUT_FEATURES, IN_FEATURES), minval=-bound, maxval=bound,
        dtype=jnp.float32)
    bias = jax.random.uniform(
        kb, (OUT_FEATURES,), minval=-bound, maxval=bound, dtype=jnp.float32)

    y = linear_pallas(x, weight, bias)
    jax.block_until_ready(y)

    # Sanity-check against plain JAX reference of nn.Linear forward.
    # (Keep 1e-5 tolerance: f32 MXU emulation may differ from pure-JAX ~1e-6.)
    y_ref = x @ weight.T + bias
    assert y.shape == (B, OUT_FEATURES)
    assert jnp.allclose(y, y_ref, atol=1e-5, rtol=1e-5)

    print("KERNEL_OK")
</pallas_src>

<mosaic_0001>
module attributes {stable_mosaic.version = 11 : i64} {
  func.func @linear_kernel(%arg0: memref<8x20xf32, #tpu.memory_space<vmem>>, %arg1: memref<21x2xf32, #tpu.memory_space<vmem>>, %arg2: memref<8x2xf32, #tpu.memory_space<vmem>>) attributes {dimension_semantics = [], scalar_prefetch = 0 : i64, scratch_operands = 0 : i64, tpu.core_type = #tpu.core_type<tc>} {
    %c0 = arith.constant 0 : index
    %c0_0 = arith.constant 0 : index
    %0 = vector.load %arg0[%c0, %c0_0] : memref<8x20xf32, #tpu.memory_space<vmem>>, vector<8x20xf32>
    %c0_1 = arith.constant 0 : index
    %c0_2 = arith.constant 0 : index
    %1 = vector.load %arg1[%c0_1, %c0_2] : memref<21x2xf32, #tpu.memory_space<vmem>>, vector<20x2xf32>
    %c20 = arith.constant 20 : index
    %c0_3 = arith.constant 0 : index
    %2 = vector.load %arg1[%c20, %c0_3] : memref<21x2xf32, #tpu.memory_space<vmem>>, vector<1x2xf32>
    %cst = arith.constant dense<0.000000e+00> : vector<8x2xf32>
    %3 = tpu.matmul %0, %1, %cst {dimension_numbers = #tpu.dot_dimension_numbers<[1], [0], [0], [1], [0, 0, 1, 1], [], []>} : vector<8x20xf32>, vector<20x2xf32>, vector<8x2xf32> -> vector<8x2xf32>
    %4 = vector.broadcast %2 : vector<1x2xf32> to vector<8x2xf32>
    %5 = arith.addf %3, %4 : vector<8x2xf32>
    %c0_4 = arith.constant 0 : index
    %c0_5 = arith.constant 0 : index
    %6 = vector.load %arg2[%c0_4, %c0_5] : memref<8x2xf32, #tpu.memory_space<vmem>>, vector<8x2xf32>
    tpu.vector_store %arg2[%c0_4, %c0_5], %5 {strides = array<i32>} : memref<8x2xf32, #tpu.memory_space<vmem>>, vector<8x2xf32>,
    return
  }
}

</mosaic_0001>

<llo_original>
// kernel: linear_pallas.1
$region0: #{linear_pallas.1}
  #allocation0 [shape = 'u32[]', space=smem, size = 0x4, offset = 0x4, fixed_abs, tag = 'smem constant byte address 0x4 - core index']
  #allocation1 [shape = 'u32[144,128]{1,0:T(1,128)}', space=vmem, size = 0x12000, scoped, tag = 'internal scratch']
  %s0 = inlined_call_operand.vmem [shape: f32[8,20], index: 0, kind: input, shape index: {}]
  %s1 = inlined_call_operand.vmem [shape: f32[21,2], index: 1, kind: input, shape index: {}]
  %s2 = inlined_call_operand.vmem [shape: f32[8,2], index: 2, kind: output, shape index: {}]
  %s3 = sld [smem:[#allocation0]]
  $region18: #{linear_pallas.1} parent=0
    _
  %s5 = ssub.s32 1, %s3
  %s6 = scalar_select 0, %s5, %s3
  // Predicated region
  $region2: #{linear_pallas.1} parent=0 // pred_check
    _
  $region3: #{linear_pallas.1} parent=0 // pred_check_branch
    %8 = sbr.rel (0) target = $region5
  $region4: #{linear_pallas.1} parent=0 // pred_region
    _
  $region5: #{linear_pallas.1} parent=0 // pred_fallthru
    _
  // Predicated region
  $region6: #{linear_pallas.1} parent=0 // pred_check
    _
  $region7: #{linear_pallas.1} parent=0 // pred_check_branch
    %10 = sbr.rel (0) target = $region9
  $region8: #{linear_pallas.1} parent=0 // pred_region
    _
  $region9: #{linear_pallas.1} parent=0 // pred_fallthru
    _
  %v11 = vld [vmem:[%s0] sm:$0xff]
  %v12 = vld [vmem:[%s1] sm:$0xff]
  %v13 = vld [vmem:[%s1 + $0x8] sm:$0xff]
  %v14 = vld [vmem:[%s1 + $0x10] sm:$0xf]
  %v15 = vld [vmem:[%s1 + $0x14] sm:$0x1]
  %v16 = vlaneseq
  %v17 = vshrl.u32 %v16, 7
  %v18 = vsub.s32 0, %v17
  %v19 = vrot.slane %v15, %v18
  %vm20 = vcmask 162816
  %v22 = vsel %vm20, %v11, 0
  %vm24 = vcmask 1043456
  %v26 = vsel %vm24, %v14, 0
  %28 = vmatprep.subr.mxu0 0.0
  %29 = vmatpush1.msra.mxu0 %v12
  %30 = vmatprep.subr.mxu0 0.0
  %31 = vmatpush1.msra.mxu0 %v13
  %32 = vmatprep.subr.mxu0 0.0
  %33 = vmatpush1.msra.mxu0 %v26
  %34 = vmatprep.subr.mxu0 0.0
  %35 = vmatpush1.msra.mxu0 0.0
  %36 = vmatprep.subr.mxu0 0.0
  %37 = vmatpush1.msra.mxu0 0.0
  %38 = vmatprep.subr.mxu0 0.0
  %39 = vmatpush1.msra.mxu0 0.0
  %40 = vmatprep.subr.mxu0 0.0
  %41 = vmatpush1.msra.mxu0 0.0
  %42 = vmatprep.subr.mxu0 0.0
  %43 = vmatpush1.msra.mxu0 0.0
  %44 = vmatprep.subr.mxu0 0.0
  %45 = vmatpush1.msra.mxu0 0.0
  %46 = vmatprep.subr.mxu0 0.0
  %47 = vmatpush1.msra.mxu0 0.0
  %48 = vmatprep.subr.mxu0 0.0
  %49 = vmatpush1.msra.mxu0 0.0
  %50 = vmatprep.subr.mxu0 0.0
  %51 = vmatpush1.msra.mxu0 0.0
  %52 = vmatprep.subr.mxu0 0.0
  %53 = vmatpush1.msra.mxu0 0.0
  %54 = vmatprep.subr.mxu0 0.0
  %55 = vmatpush1.msra.mxu0 0.0
  %56 = vmatprep.subr.mxu0 0.0
  %57 = vmatpush1.msra.mxu0 0.0
  %58 = vmatprep.subr.mxu0 0.0
  %59 = vmatpush1.msra.mxu0 0.0
  %60 = vmatprep.subr.mxu0 0.0
  %61 = vmatpush1.msra.mxu0 0.0
  %62 = vmatprep.subr.mxu0 0.0
  %63 = vmatpush1.msra.mxu0 0.0
  %64 = vmatprep.subr.mxu0 0.0
  %65 = vmatpush1.msra.mxu0 0.0
  %66 = vmatprep.subr.mxu0 0.0
  %67 = vmatpush1.msra.mxu0 0.0
  %68 = vmatprep.subr.mxu0 0.0
  %69 = vmatpush1.msra.mxu0 0.0
  %70 = vmatprep.subr.mxu0 0.0
  %71 = vmatpush1.msra.mxu0 0.0
  %72 = vmatprep.subr.mxu0 0.0
  %73 = vmatpush1.msra.mxu0 0.0
  %74 = vmatprep.subr.mxu0 0.0
  %75 = vmatpush1.msra.mxu0 0.0
  %76 = vmatprep.subr.mxu0 0.0
  %77 = vmatpush1.msra.mxu0 0.0
  %78 = vmatprep.subr.mxu0 0.0
  %79 = vmatpush1.msra.mxu0 0.0
  %80 = vmatprep.subr.mxu0 0.0
  %81 = vmatpush1.msra.mxu0 0.0
  %82 = vmatprep.subr.mxu0 0.0
  %83 = vmatpush1.msra.mxu0 0.0
  %84 = vmatprep.subr.mxu0 0.0
  %85 = vmatpush1.msra.mxu0 0.0
  %86 = vmatprep.subr.mxu0 0.0
  %87 = vmatpush1.msra.mxu0 0.0
  %88 = vmatprep.subr.mxu0 0.0
  %89 = vmatpush1.msra.mxu0 0.0
  %90 = vmatprep.subr.mxu0 0.0
  %91 = vmatpush1.msra.mxu0 0.0
  %92 = vmatprep.mubr.f32.mxu0 0.0
  %93 = vmatmul.mubr.f32.gmra.mrb[0].mxu0 %v22
  %v94 = vpop.f32.mrb[0].mxu0
  %v95 = vadd.f32 %v19, %v94
  %v96 = vpop.f32.mrb[0].mxu0
  %97 = vdwg.mxu0
  %vm98 = vcmask 15360
  %99 = vst.msk [vmem:[%s2] sm:$0xff] %vm98, %v95
  // Predicated region
  $region10: #{linear_pallas.1} parent=0 // pred_check
    _
  $region11: #{linear_pallas.1} parent=0 // pred_check_branch
    %101 = sbr.rel (0) target = $region13
  $region12: #{linear_pallas.1} parent=0 // pred_region
    _
  $region13: #{linear_pallas.1} parent=0 // pred_fallthru
    _
  // Predicated region
  $region14: #{linear_pallas.1} parent=0 // pred_check
    _
  $region15: #{linear_pallas.1} parent=0 // pred_check_branch
    %103 = sbr.rel (0) target = $region17
  $region16: #{linear_pallas.1} parent=0 // pred_region
    _
  $region17: #{linear_pallas.1} parent=0 // pred_fallthru
    _

</llo_original>
